<compile_context>
chip_gen: v7x
topology: tpu7x:2x2x1
jax: 0.10.0
libtpu: 0.0.40
codegen_flags: <defaults>
</compile_context>

<pallas_src>
import functools

import jax
import jax.numpy as jnp
from jax.experimental import pallas as pl
from jax.experimental.pallas import tpu as pltpu


def _round_up(x, m):
    return (x + m - 1) // m * m


# Tiling preferences.  bf16 operands run at native MXU rate on v5e/v6e/v7x; the
# accumulator is fp32 in VMEM scratch.  256-wide N tiles help v6e/v7x; on v5e a
# 128-wide tile is already optimal (256 costs nothing, it just loops the MXU).
_TM = 128            # preferred M tile
_TN = 256            # preferred N tile (multiple of 128)
_K_SINGLE = 4608     # reductions up to this length run as a single K block
                     # (max here is 3*3*512; < 5 MiB double-buffered in bf16)
_VMEM_LIMIT = 32 * 1024 * 1024   # actual per-call usage is ~5 MiB; fits all gens


# ----------------------------------------------------------------------------
# Pallas kernels
# ----------------------------------------------------------------------------
def _mm_kernel(*refs, act, has_res):
    """acc += a @ b ; last k-step: out = act(acc + shift) [+ residual]."""
    if has_res:
        a_ref, b_ref, shift_ref, res_ref, o_ref, acc_ref = refs
    else:
        a_ref, b_ref, shift_ref, o_ref, acc_ref = refs
        res_ref = None

    @pl.when(pl.program_id(2) == 0)
    def _():
        acc_ref[...] = jnp.zeros_like(acc_ref)

    acc_ref[...] += jnp.dot(a_ref[...], b_ref[...],
                            preferred_element_type=jnp.float32)

    @pl.when(pl.program_id(2) == pl.num_programs(2) - 1)
    def _():
        y = acc_ref[...] + shift_ref[...]          # folded BN shift / conv bias
        if act == "relu":
            y = jnp.maximum(y, 0.0)
        elif act == "leaky":
            y = jnp.where(y > 0.0, y, 0.2 * y)     # nn.LeakyReLU(0.2)
        if res_ref is not None:                    # fused skip-connection add
            y = y + res_ref[...].astype(jnp.float32)
        o_ref[...] = y.astype(o_ref.dtype)


@functools.partial(jax.jit, static_argnames=("act",))
def matmul_bias_act(a, b, shift, act="none", residual=None):
    """out = act(a @ b + shift) [+ residual]; bf16 operands, f32 accumulate,
    bf16 output.  a:(M,K) b:(K,N) shift:(N,) residual:(M,N) or None."""
    M, K = a.shape
    _, N = b.shape

    # M tiling: tiny M is padded only to a sublane multiple, not a full 128 tile.
    if M > _TM:
        Mp, tm = _round_up(M, _TM), _TM
    else:
        Mp = _round_up(M, 8)
        tm = Mp
    # N tiling: full-dim block for narrow outputs (no padding), 128/256 otherwise.
    if N < 128:
        Np, tn = N, N
    else:
        Np = _round_up(N, 128)
        tn = _TN if Np % _TN == 0 else 128
    # K tiling: whole reduction in one block when it fits comfortably in VMEM.
    if K <= _K_SINGLE:
        Kp, tk = K, K
    else:
        tk = 512 if K % 512 == 0 else 256
        Kp = _round_up(K, tk)

    a_p = a.astype(jnp.bfloat16)
    b_p = b.astype(jnp.bfloat16)
    if (Mp, Kp) != (M, K):
        a_p = jnp.pad(a_p, ((0, Mp - M), (0, Kp - K)))
    if (Kp, Np) != (K, N):
        b_p = jnp.pad(b_p, ((0, Kp - K), (0, Np - N)))
    sh = shift.astype(jnp.float32)
    if Np != N:
        sh = jnp.pad(sh, (0, Np - N))
    sh = sh.reshape(1, Np)

    inputs = [a_p, b_p, sh]
    in_specs = [
        pl.BlockSpec((tm, tk), lambda i, j, k: (i, k)),
        pl.BlockSpec((tk, tn), lambda i, j, k: (k, j)),
        pl.BlockSpec((1, tn), lambda i, j, k: (0, j)),
    ]
    has_res = residual is not None
    if has_res:
        r_p = residual.astype(jnp.bfloat16)
        if (Mp, Np) != (M, N):
            r_p = jnp.pad(r_p, ((0, Mp - M), (0, Np - N)))
        inputs.append(r_p)
        in_specs.append(pl.BlockSpec((tm, tn), lambda i, j, k: (i, j)))

    out = pl.pallas_call(
        functools.partial(_mm_kernel, act=act, has_res=has_res),
        out_shape=jax.ShapeDtypeStruct((Mp, Np), jnp.bfloat16),
        grid_spec=pltpu.PrefetchScalarGridSpec(
            num_scalar_prefetch=0,
            grid=(Mp // tm, Np // tn, Kp // tk),
            in_specs=in_specs,
            out_specs=pl.BlockSpec((tm, tn), lambda i, j, k: (i, j)),
            scratch_shapes=[pltpu.VMEM((tm, tn), jnp.float32)]),
        compiler_params=pltpu.CompilerParams(
            dimension_semantics=("parallel", "parallel", "arbitrary"),
            vmem_limit_bytes=_VMEM_LIMIT),
    )(*inputs)
    if (Mp, Np) != (M, N):
        out = out[:M, :N]
    return out


def _add_act_kernel(a_ref, b_ref, o_ref, *, act):
    y = a_ref[...].astype(jnp.float32) + b_ref[...].astype(jnp.float32)
    if act == "relu":
        y = jnp.maximum(y, 0.0)
    o_ref[...] = y.astype(o_ref.dtype)


@functools.partial(jax.jit, static_argnames=("act",))
def add_act(a, b, act="none"):
    """Elementwise a + b (optional ReLU) for NHWC tensors; row-tiled grid."""
    B, H, W, C = a.shape
    R = B * H * W
    a2 = a.reshape(R, C)
    b2 = b.reshape(R, C)
    Rp = _round_up(R, 8)
    if Rp != R:
        a2 = jnp.pad(a2, ((0, Rp - R), (0, 0)))
        b2 = jnp.pad(b2, ((0, Rp - R), (0, 0)))
    tr = 256 if (Rp > 256 and Rp % 256 == 0) else Rp
    out = pl.pallas_call(
        functools.partial(_add_act_kernel, act=act),
        out_shape=jax.ShapeDtypeStruct((Rp, C), jnp.bfloat16),
        grid_spec=pltpu.PrefetchScalarGridSpec(
            num_scalar_prefetch=0,
            grid=(Rp // tr,),
            in_specs=[pl.BlockSpec((tr, C), lambda i: (i, 0)),
                      pl.BlockSpec((tr, C), lambda i: (i, 0))],
            out_specs=pl.BlockSpec((tr, C), lambda i: (i, 0))),
        compiler_params=pltpu.CompilerParams(
            dimension_semantics=("parallel",),
            vmem_limit_bytes=_VMEM_LIMIT),
    )(a2, b2)
    if Rp != R:
        out = out[:R]
    return out.reshape(B, H, W, C)


def _se_tail_kernel(x_ref, u_ref, id_ref, o_ref):
    y = (x_ref[...].astype(jnp.float32) * u_ref[...].astype(jnp.float32)
         + id_ref[...].astype(jnp.float32))
    o_ref[...] = jnp.maximum(y, 0.0).astype(o_ref.dtype)


@jax.jit
def se_tail(x, u, identity):
    """relu(x * u + identity); x/identity NHWC (bf16), u (B, C) f32 broadcast."""
    B, H, W, C = x.shape
    HW = H * W
    t_hw = 512 if (HW > 512 and HW % 512 == 0) else HW
    x3 = x.reshape(B, HW, C)
    id3 = identity.reshape(B, HW, C)
    u3 = u.reshape(B, 1, C).astype(jnp.float32)
    out = pl.pallas_call(
        _se_tail_kernel,
        out_shape=jax.ShapeDtypeStruct((B, HW, C), jnp.bfloat16),
        grid_spec=pltpu.PrefetchScalarGridSpec(
            num_scalar_prefetch=0,
            grid=(B, HW // t_hw),
            in_specs=[pl.BlockSpec((1, t_hw, C), lambda b, i: (b, i, 0)),
                      pl.BlockSpec((1, 1, C), lambda b, i: (b, 0, 0)),
                      pl.BlockSpec((1, t_hw, C), lambda b, i: (b, i, 0))],
            out_specs=pl.BlockSpec((1, t_hw, C), lambda b, i: (b, i, 0))),
        compiler_params=pltpu.CompilerParams(
            dimension_semantics=("parallel", "parallel"),
            vmem_limit_bytes=_VMEM_LIMIT),
    )(x3, u3, id3)
    return out.reshape(B, H, W, C)


# ----------------------------------------------------------------------------
# Convolution wrappers (JAX glue + Pallas matmul hot path)
# ----------------------------------------------------------------------------
def _im2col(x, kh, kw, stride, padding):
    # TODO(synk): patches are materialized in HBM (kh*kw duplicated reads, bf16);
    # a tap-indexed reduction grid axis over the padded NHWC input would remove it.
    B, H, W, C = x.shape
    xp = jnp.pad(x, ((0, 0), (padding, padding), (padding, padding), (0, 0)))
    Ho = (H + 2 * padding - kh) // stride + 1
    Wo = (W + 2 * padding - kw) // stride + 1
    cols = []
    for i in range(kh):
        for j in range(kw):
            cols.append(xp[:, i: i + stride * (Ho - 1) + 1: stride,
                           j: j + stride * (Wo - 1) + 1: stride, :])
    patches = jnp.concatenate(cols, axis=-1)
    return patches.reshape(B * Ho * Wo, kh * kw * C), (B, Ho, Wo)


def conv2d(x, w, stride=1, padding=0, scale=None, shift=None, act="none",
           residual=None):
    # w: PyTorch Conv2d layout (Cout, Cin, KH, KW).  BN scale folded into the
    # weight columns; BN shift / conv bias applied in the matmul epilogue.
    cout, cin, kh, kw = w.shape
    patches, (B, Ho, Wo) = _im2col(x, kh, kw, stride, padding)
    w2 = jnp.transpose(w, (2, 3, 1, 0)).reshape(kh * kw * cin, cout)
    w2 = w2.astype(jnp.float32)
    if scale is not None:
        w2 = w2 * scale.astype(jnp.float32)
    if shift is None:
        shift = jnp.zeros((cout,), jnp.float32)
    res2 = None if residual is None else residual.reshape(B * Ho * Wo, cout)
    y = matmul_bias_act(patches, w2, shift, act=act, residual=res2)
    return y.reshape(B, Ho, Wo, cout)


def conv_transpose2d(x, w, stride, padding, output_padding,
                     scale=None, shift=None, act="none"):
    """ConvTranspose2d via sub-pixel decomposition: a single stride-1 matmul on
    the (un-dilated) input against a packed (win^2*Cin, s^2*Cout) weight followed
    by a pixel shuffle.  w: PyTorch ConvTranspose2d layout (Cin, Cout, KH, KW)."""
    cin, cout, kh, kw = w.shape
    if kh != kw:
        raise NotImplementedError("square kernels only")
    s, p, op, k = stride, padding, output_padding, kh
    B, H, W, _ = x.shape
    Ho = (H - 1) * s - 2 * p + k + op
    Wo = (W - 1) * s - 2 * p + k + op
    if Ho % s or Wo % s:
        raise NotImplementedError("output size must be a multiple of stride")
    Hq, Wq = Ho // s, Wo // s
    # Per-output-phase taps (1-D; kernel is square so H and W share it).
    taps = [(r, ki, (r + p - ki) // s)
            for r in range(s) for ki in range(k) if (r + p - ki) % s == 0]
    rel_min = min(t[2] for t in taps)
    rel_max = max(t[2] for t in taps)
    win = rel_max - rel_min + 1
    pad_lo = max(0, -rel_min)
    pad_hi_h = max(0, Hq - 1 + rel_max - (H - 1))
    pad_hi_w = max(0, Wq - 1 + rel_max - (W - 1))
    xp = jnp.pad(x, ((0, 0), (pad_lo, pad_hi_h), (pad_lo, pad_hi_w), (0, 0)))
    cols = []
    for wi in range(win):
        si = rel_min + wi + pad_lo
        for wj in range(win):
            sj = rel_min + wj + pad_lo
            cols.append(xp[:, si:si + Hq, sj:sj + Wq, :])
    patches = jnp.concatenate(cols, axis=-1).reshape(B * Hq * Wq, win * win * cin)
    # Packed weight (win, win, Cin, s, s, Cout); zero where a tap misses a phase.
    wp = jnp.zeros((win, win, cin, s, s, cout), jnp.float32)
    for (rh, ki, reli) in taps:
        for (rw, kj, relj) in taps:
            wp = wp.at[reli - rel_min, relj - rel_min, :, rh, rw, :].set(
                w[:, :, ki, kj].astype(jnp.float32))
    if scale is not None:                       # fold BN scale into the weight
        wp = wp * scale.astype(jnp.float32)
    if shift is None:
        shift = jnp.zeros((cout,), jnp.float32)
    shift_packed = jnp.tile(shift.astype(jnp.float32), s * s)
    w2 = wp.reshape(win * win * cin, s * s * cout)
    y = matmul_bias_act(patches, w2, shift_packed, act=act)
    y = y.reshape(B, Hq, Wq, s, s, cout)
    return y.transpose(0, 1, 3, 2, 4, 5).reshape(B, Ho, Wo, cout)


def maxpool3x3_s2_p1(x):
    B, H, W, C = x.shape
    neg = float(jnp.finfo(x.dtype).min)
    xp = jnp.pad(x, ((0, 0), (1, 1), (1, 1), (0, 0)), constant_values=neg)
    Ho = (H + 2 - 3) // 2 + 1
    Wo = (W + 2 - 3) // 2 + 1
    out = None
    for i in range(3):
        for j in range(3):
            sl = xp[:, i: i + 2 * (Ho - 1) + 1: 2, j: j + 2 * (Wo - 1) + 1: 2, :]
            out = sl if out is None else jnp.maximum(out, sl)
    return out


# ----------------------------------------------------------------------------
# Parameter construction (deterministic, mirrors the PyTorch __init__ shapes)
# ----------------------------------------------------------------------------
class _KeyGen:
    def __init__(self, key):
        self._key = key

    def __call__(self):
        self._key, sub = jax.random.split(self._key)
        return sub


def _conv_w(kg, cout, cin, kh, kw):
    fan_in = cin * kh * kw
    return jax.random.normal(kg(), (cout, cin, kh, kw), jnp.float32) * (2.0 / fan_in) ** 0.5


def _convT_w(kg, cin, cout, kh, kw):
    fan_in = cin * kh * kw
    return jax.random.normal(kg(), (cin, cout, kh, kw), jnp.float32) * (2.0 / fan_in) ** 0.5


def _bn_p(kg, c):
    # TODO(synk): PyTorch train-mode BN uses batch statistics; here inference-mode
    # (running-stat) BN is folded into the matmul epilogue.
    return {
        "gamma": 1.0 + 0.1 * jax.random.normal(kg(), (c,), jnp.float32),
        "beta": 0.1 * jax.random.normal(kg(), (c,), jnp.float32),
        "mean": 0.1 * jax.random.normal(kg(), (c,), jnp.float32),
        "var": 1.0 + jax.random.uniform(kg(), (c,), jnp.float32),
    }


def _make_block(kg, inplanes, planes, stride, with_downsample):
    cr = planes // 16  # SELayer ratio=16
    p = {
        "conv1": _conv_w(kg, planes, inplanes, 3, 3),
        "bn1": _bn_p(kg, planes),
        "conv2": _conv_w(kg, planes, planes, 3, 3),
        "bn2": _bn_p(kg, planes),
        "se_w1": jax.random.normal(kg(), (planes, cr), jnp.float32) * (2.0 / planes) ** 0.5,
        "se_w2": jax.random.normal(kg(), (cr, planes), jnp.float32) * (2.0 / cr) ** 0.5,
        "stride": stride,
        "downsample": None,
    }
    if with_downsample:
        p["downsample"] = {"conv": _conv_w(kg, planes, inplanes, 1, 1),
                           "bn": _bn_p(kg, planes)}
    return p


def _make_layer(kg, inplanes, planes, nblocks, stride):
    blocks = [_make_block(kg, inplanes, planes, stride,
                          stride != 1 or inplanes != planes)]
    for _ in range(1, nblocks):
        blocks.append(_make_block(kg, planes, planes, 1, False))
    return blocks, planes


def _make_decoder(kg, inplanes, planes, stride):
    m = inplanes // 4
    return {
        "conv1": _conv_w(kg, m, inplanes, 1, 1), "bn1": _bn_p(kg, m),
        "deconv": _convT_w(kg, m, m, 3, 3), "bn2": _bn_p(kg, m),
        "conv3": _conv_w(kg, planes, m, 1, 1), "bn3": _bn_p(kg, planes),
        "stride": stride,
    }


def init_params(key):
    kg = _KeyGen(key)
    P = {"conv1": _conv_w(kg, 64, 4, 7, 7), "bn1": _bn_p(kg, 64)}
    inpl = 64
    P["layer1"], inpl = _make_layer(kg, inpl, 64, 3, 1)
    P["layer2"], inpl = _make_layer(kg, inpl, 128, 4, 2)
    P["layer3"], inpl = _make_layer(kg, inpl, 256, 6, 2)
    P["layer4"], inpl = _make_layer(kg, inpl, 512, 3, 2)
    P["decoder4"] = _make_decoder(kg, 512, 256, 2)
    P["decoder3"] = _make_decoder(kg, 256, 128, 2)
    P["decoder2"] = _make_decoder(kg, 128, 64, 2)
    P["decoder1"] = _make_decoder(kg, 64, 64, 1)
    P["deconv1_w"] = _convT_w(kg, 64, 32, 3, 3)
    P["deconv1_b"] = 0.01 * jax.random.normal(kg(), (32,), jnp.float32)
    P["conv_w"] = _conv_w(kg, 32, 32, 3, 3)
    P["conv_b"] = 0.01 * jax.random.normal(kg(), (32,), jnp.float32)
    P["deconv2_w"] = _convT_w(kg, 32, 2, 2, 2)
    P["deconv2_b"] = 0.01 * jax.random.normal(kg(), (2,), jnp.float32)
    return P


# ----------------------------------------------------------------------------
# Forward pass (matches ResBase.forward)
# ----------------------------------------------------------------------------
def _bn_affine(bn):
    scale = bn["gamma"] / jnp.sqrt(bn["var"] + 1e-5)
    shift = bn["beta"] - bn["mean"] * scale
    return scale, shift


def se_basic_block(x, p):
    identity = x
    s, b = _bn_affine(p["bn1"])
    out = conv2d(x, p["conv1"], stride=p["stride"], padding=1, scale=s, shift=b, act="relu")
    s, b = _bn_affine(p["bn2"])
    out = conv2d(out, p["conv2"], stride=1, padding=1, scale=s, shift=b, act="none")
    if p["downsample"] is not None:
        s, b = _bn_affine(p["downsample"]["bn"])
        identity = conv2d(x, p["downsample"]["conv"], stride=p["stride"], padding=0,
                          scale=s, shift=b, act="none")
    # SE FC layers in plain JAX (M = batch is tiny; MXU-kernel padding would waste 64x).
    u = jnp.mean(out.astype(jnp.float32), axis=(1, 2))                 # (B, C)
    h = jnp.maximum(u @ p["se_w1"], 0.0)
    u = jax.nn.sigmoid(h @ p["se_w2"])
    # relu(out * u + identity) fused in the se_tail Pallas kernel.
    return se_tail(out, u, identity)


def run_layer(x, blocks):
    for p in blocks:
        x = se_basic_block(x, p)
    return x


def decoder_block(x, p, residual=None):
    s, b = _bn_affine(p["bn1"])
    x = conv2d(x, p["conv1"], scale=s, shift=b, act="relu")
    s, b = _bn_affine(p["bn2"])
    x = conv_transpose2d(x, p["deconv"], p["stride"], 1, p["stride"] - 1,
                         scale=s, shift=b, act="relu")
    s, b = _bn_affine(p["bn3"])
    # Skip connection (decoder output + encoder sum) fused into the conv3 epilogue.
    return conv2d(x, p["conv3"], scale=s, shift=b, act="relu", residual=residual)


def encoder(x, P):
    s, b = _bn_affine(P["bn1"])
    x = conv2d(x, P["conv1"], stride=2, padding=3, scale=s, shift=b, act="relu")
    x1 = maxpool3x3_s2_p1(x)
    x1 = run_layer(x1, P["layer1"])
    x2 = run_layer(x1, P["layer2"])
    x3 = run_layer(x2, P["layer3"])
    x4 = run_layer(x3, P["layer4"])
    return x1, x2, x3, x4


def resbase_forward(t1, t2, P):
    t1 = jnp.transpose(t1, (0, 2, 3, 1)).astype(jnp.bfloat16)   # NCHW -> NHWC, bf16
    t2 = jnp.transpose(t2, (0, 2, 3, 1)).astype(jnp.bfloat16)
    a1, a2, a3, a4 = encoder(t1, P)
    b1, b2, b3, b4 = encoder(t2, P)
    d4 = decoder_block(add_act(a4, b4), P["decoder4"], residual=add_act(a3, b3))
    d3 = decoder_block(d4, P["decoder3"], residual=add_act(a2, b2))
    d2 = decoder_block(d3, P["decoder2"], residual=add_act(a1, b1))
    d1 = decoder_block(d2, P["decoder1"])
    x = conv_transpose2d(d1, P["deconv1_w"], 2, 1, 1, shift=P["deconv1_b"], act="leaky")
    x = conv2d(x, P["conv_w"], stride=1, padding=1, shift=P["conv_b"], act="leaky")
    x = conv_transpose2d(x, P["deconv2_w"], 2, 0, 0, shift=P["deconv2_b"], act="none")
    return jnp.transpose(x.astype(jnp.float32), (0, 3, 1, 2))   # NHWC -> NCHW


if __name__ == "__main__":
    key = jax.random.PRNGKey(0)
    kp, k1, k2 = jax.random.split(key, 3)
    params = init_params(kp)
    # 32x32 is the smallest spatial size for which the decoder skip shapes line up.
    t1 = jax.random.normal(k1, (2, 4, 32, 32), jnp.float32)
    t2 = jax.random.normal(k2, (2, 4, 32, 32), jnp.float32)
    out = resbase_forward(t1, t2, params)
    out = jax.block_until_ready(out)
    assert out.shape == (2, 2, 32, 32), out.shape
    assert bool(jnp.all(jnp.isfinite(out)))
    print("KERNEL_OK")
</pallas_src>

<mosaic_0001>
module attributes {stable_mosaic.version = 11 : i64} {
  func.func @_mm_kernel(%arg0: i32, %arg1: i32, %arg2: i32, %arg3: memref<128x196xbf16, #tpu.memory_space<vmem>>, %arg4: memref<196x64xbf16, #tpu.memory_space<vmem>>, %arg5: memref<1x64xf32, #tpu.memory_space<vmem>>, %arg6: memref<128x64xbf16, #tpu.memory_space<vmem>>, %arg7: memref<128x64xf32, #tpu.memory_space<vmem>>) attributes {dimension_semantics = [#tpu.dimension_semantics<parallel>, #tpu.dimension_semantics<parallel>, #tpu.dimension_semantics<arbitrary>], iteration_bounds = array<i64: 4, 1, 1>, scalar_prefetch = 0 : i64, scratch_operands = 1 : i64, tpu.core_type = #tpu.core_type<tc>, window_params = [{transform_indices = @transform_0, window_bounds = array<i64: 128, 196>}, {transform_indices = @transform_1, window_bounds = array<i64: 196, 64>}, {transform_indices = @transform_2, window_bounds = array<i64: 1, 64>}, {transform_indices = @transform_3, window_bounds = array<i64: 128, 64>}]} {
    %c0_i32 = arith.constant 0 : i32
    %0 = arith.cmpi eq, %arg2, %c0_i32 : i32
    %1 = arith.extui %0 : i1 to i32
    %c0_i32_0 = arith.constant 0 : i32
    %2 = arith.cmpi ne, %1, %c0_i32_0 : i32
    scf.if %2 {
      %cst_10 = arith.constant 0.000000e+00 : f32
      %12 = vector.broadcast %cst_10 : f32 to vector<128x64xf32>
      %c0_11 = arith.constant 0 : index
      %c0_12 = arith.constant 0 : index
      %13 = vector.load %arg7[%c0_11, %c0_12] : memref<128x64xf32, #tpu.memory_space<vmem>>, vector<128x64xf32>
      tpu.vector_store %arg7[%c0_11, %c0_12], %12 {strides = array<i32>} : memref<128x64xf32, #tpu.memory_space<vmem>>, vector<128x64xf32>,
    } else {
    }
    %c0 = arith.constant 0 : index
    %c0_1 = arith.constant 0 : index
    %3 = vector.load %arg7[%c0, %c0_1] : memref<128x64xf32, #tpu.memory_space<vmem>>, vector<128x64xf32>
    %c0_2 = arith.constant 0 : index
    %c0_3 = arith.constant 0 : index
    %4 = vector.load %arg3[%c0_2, %c0_3] : memref<128x196xbf16, #tpu.memory_space<vmem>>, vector<128x196xbf16>
    %c0_4 = arith.constant 0 : index
    %c0_5 = arith.constant 0 : index
    %5 = vector.load %arg4[%c0_4, %c0_5] : memref<196x64xbf16, #tpu.memory_space<vmem>>, vector<196x64xbf16>
    %cst = arith.constant dense<0.000000e+00> : vector<128x64xf32>
    %6 = tpu.matmul %4, %5, %cst {dimension_numbers = #tpu.dot_dimension_numbers<[1], [0], [0], [1], [0, 0, 1, 1], [], []>} : vector<128x196xbf16>, vector<196x64xbf16>, vector<128x64xf32> -> vector<128x64xf32>
    %7 = arith.addf %3, %6 : vector<128x64xf32>
    %c0_6 = arith.constant 0 : index
    %c0_7 = arith.constant 0 : index
    %8 = vector.load %arg7[%c0_6, %c0_7] : memref<128x64xf32, #tpu.memory_space<vmem>>, vector<128x64xf32>
    tpu.vector_store %arg7[%c0_6, %c0_7], %7 {strides = array<i32>} : memref<128x64xf32, #tpu.memory_space<vmem>>, vector<128x64xf32>,
    %c0_i32_8 = arith.constant 0 : i32
    %9 = arith.cmpi eq, %arg2, %c0_i32_8 : i32
    %10 = arith.extui %9 : i1 to i32
    %c0_i32_9 = arith.constant 0 : i32
    %11 = arith.cmpi ne, %10, %c0_i32_9 : i32
    scf.if %11 {
      %c0_10 = arith.constant 0 : index
      %c0_11 = arith.constant 0 : index
      %12 = vector.load %arg7[%c0_10, %c0_11] : memref<128x64xf32, #tpu.memory_space<vmem>>, vector<128x64xf32>
      %c0_12 = arith.constant 0 : index
      %c0_13 = arith.constant 0 : index
      %13 = vector.load %arg5[%c0_12, %c0_13] : memref<1x64xf32, #tpu.memory_space<vmem>>, vector<1x64xf32>
      %14 = vector.broadcast %13 : vector<1x64xf32> to vector<128x64xf32>
      %15 = arith.addf %12, %14 : vector<128x64xf32>
      %cst_14 = arith.constant 0.000000e+00 : f32
      %16 = vector.broadcast %cst_14 : f32 to vector<128x64xf32>
      %17 = arith.maximumf %15, %16 : vector<128x64xf32>
      %18 = arith.truncf %17 : vector<128x64xf32> to vector<128x64xbf16>
      %c0_15 = arith.constant 0 : index
      %c0_16 = arith.constant 0 : index
      %19 = vector.load %arg6[%c0_15, %c0_16] : memref<128x64xbf16, #tpu.memory_space<vmem>>, vector<128x64xbf16>
      tpu.vector_store %arg6[%c0_15, %c0_16], %18 {strides = array<i32>} : memref<128x64xbf16, #tpu.memory_space<vmem>>, vector<128x64xbf16>,
    } else {
    }
    return
  }
  func.func @transform_0(%arg0: i32, %arg1: i32, %arg2: i32) -> (i32, i32) {
    %c0_i32 = arith.constant 0 : i32
    return %arg0, %arg2 : i32, i32
  }
  func.func @transform_1(%arg0: i32, %arg1: i32, %arg2: i32) -> (i32, i32) {
    %c0_i32 = arith.constant 0 : i32
    return %arg2, %arg1 : i32, i32
  }
  func.func @transform_2(%arg0: i32, %arg1: i32, %arg2: i32) -> (i32, i32) {
    %c0_i32 = arith.constant 0 : i32
    %c0_i32_0 = arith.constant 0 : i32
    return %c0_i32, %arg1 : i32, i32
  }
  func.func @transform_3(%arg0: i32, %arg1: i32, %arg2: i32) -> (i32, i32) {
    %c0_i32 = arith.constant 0 : i32
    return %arg0, %arg1 : i32, i32
  }
}

</mosaic_0001>

<llo_original>
// kernel: matmul_bias_act.1
$region0: #{matmul_bias_act.1}
  #allocation0 [shape = 'u32[]', space=smem, size = 0x4, offset = 0x4, fixed_abs, tag = 'smem constant byte address 0x4 - core index']
  #allocation1 [shape = 'u32[144,128]{1,0:T(1,128)}', space=vmem, size = 0x12000, scoped, tag = 'internal scratch']
  #allocation2 [shape = 'f32[128,64]{1,0:T(8,128)}', space=vmem, size = 0x10000, scoped, tag = 'scratch operand']
  %s0 = inlined_call_operand.vmem [shape: bf16[512,196], index: 0, kind: input, shape index: {}]
  %s1 = inlined_call_operand.vmem [shape: bf16[196,64], index: 1, kind: input, shape index: {}]
  %s2 = inlined_call_operand.vmem [shape: f32[1,64], index: 2, kind: input, shape index: {}]
  %s3 = inlined_call_operand.vmem [shape: bf16[512,64], index: 3, kind: output, shape index: {}]
  %s4 = sld [smem:[#allocation0]]
  $region53: #{matmul_bias_act.1} parent=0
    _
  %s6 = ssub.s32 1, %s4
  %s7 = scalar_select 0, %s6, %s4
  loop: start=0, step=1, limit=6
  $region2: #{matmul_bias_act.1} parent=0 // loop_pre_header
    _
  $region3: #{matmul_bias_act.1} parent=0 // loop_header
    %s9 = sphi 0, %s13
    %p10 = scmp.ge.s32.totalorder %s9, 6
    %s16 = sphi 0, %s35
    %s17 = sphi 0, %s31
    %s18 = sphi 0, %s27
    %s19 = sphi 0, %s16
    %s20 = sphi 0, %s17
    %s21 = sphi 0, %s18
    %s22 = sphi 0, %s19
    %s23 = sphi 0, %s20
    %s24 = sphi 0, %s21
    %s40 = sphi 0, %s42
    %s43 = sphi 0, %s40
    %s44 = sphi 0, %s43
    %s60 = sphi 0, %s44
    %s68 = sphi 0, %s70
    %s71 = sphi 0, %s68
    %s72 = sphi 0, %s71
    %s88 = sphi 0, %s72
    %s94 = sphi 0, %s96
    %s97 = sphi 0, %s94
    %s98 = sphi 0, %s97
    %s114 = sphi 0, %s98
    %s122 = sphi 0, %s124
    %s125 = sphi 0, %s122
    %s126 = sphi 0, %s125
    %s142 = sphi 0, %s126
  $region4: #{matmul_bias_act.1} parent=0 // loop_header_branch
    %12 = sbr.rel (%p10) target = $region8
  $region5: #{matmul_bias_act.1} parent=0 // loop_body
    %s14 = ssub.s32 %s9, 1
    %s15 = ssub.s32 %s9, 2
    %s25 = sadd.s32 1, %s18
    %p26 = scmp.ge.s32.totalorder %s25, 1
    %s27 = scalar_select %p26, 0, %s25
    %s28 = sadd.s32 1, %s17
    %s29 = scalar_select %p26, %s28, %s17
    %p30 = scmp.ge.s32.totalorder %s29, 1
    %s31 = scalar_select %p30, 0, %s29
    %s32 = sadd.s32 1, %s16
    %s33 = scalar_select %p30, %s32, %s16
    %p34 = scmp.ge.s32.totalorder %s33, 4
    %s35 = scalar_select %p34, 0, %s33
    %s36 = ssub.s32 %s16, %s35
    %s37 = ssub.s32 %s18, %s27
    %s38 = sor.u32 %s36, %s37
    %p39 = scmp.eq.s32.totalorder %s38, 0
    %s41 = sadd.s32 %s40, 1
    %s42 = scalar_select %p39, %s40, %s41
    %p45 = pneg %p39
    %p46 = scmp.eq.s32.totalorder %s9, 3
    %p47 = por %p45, %p46
    %p48 = scmp.ne.s32.totalorder %s40, %s43
    %p49 = scmp.eq.s32.totalorder %s9, 0
    %p50 = por %p48, %p49
    %p51 = scmp.ne.s32.totalorder %s40, %s43
    %p52 = scmp.eq.s32.totalorder %s14, 3
    %p53 = por %p51, %p52
    %p54 = scmp.ne.s32.totalorder %s43, %s44
    %p55 = scmp.eq.s32.totalorder %s14, 0
    %p56 = por %p54, %p55
    %p57 = scmp.ne.s32.totalorder %s43, %s44
    %p58 = scmp.eq.s32.totalorder %s15, 3
    %p59 = por %p57, %p58
    %p61 = scmp.ne.s32.totalorder %s44, %s60
    %p62 = scmp.eq.s32.totalorder %s15, 0
    %p63 = por %p61, %p62
    %s64 = ssub.s32 %s18, %s27
    %s65 = ssub.s32 %s17, %s31
    %s66 = sor.u32 %s64, %s65
    %p67 = scmp.eq.s32.totalorder %s66, 0
    %s69 = sadd.s32 %s68, 1
    %s70 = scalar_select %p67, %s68, %s69
    %p73 = pneg %p67
    %p74 = scmp.eq.s32.totalorder %s9, 3
    %p75 = por %p73, %p74
    %p76 = scmp.ne.s32.totalorder %s68, %s71
    %p77 = scmp.eq.s32.totalorder %s9, 0
    %p78 = por %p76, %p77
    %p79 = scmp.ne.s32.totalorder %s68, %s71
    %p80 = scmp.eq.s32.totalorder %s14, 3
    %p81 = por %p79, %p80
    %p82 = scmp.ne.s32.totalorder %s71, %s72
    %p83 = scmp.eq.s32.totalorder %s14, 0
    %p84 = por %p82, %p83
    %p85 = scmp.ne.s32.totalorder %s71, %s72
    %p86 = scmp.eq.s32.totalorder %s15, 3
    %p87 = por %p85, %p86
    %p89 = scmp.ne.s32.totalorder %s72, %s88
    %p90 = scmp.eq.s32.totalorder %s15, 0
    %p91 = por %p89, %p90
    %s92 = ssub.s32 %s17, %s31
    %p93 = scmp.eq.s32.totalorder %s92, 0
    %s95 = sadd.s32 %s94, 1
    %s96 = scalar_select %p93, %s94, %s95
    %p99 = pneg %p93
    %p100 = scmp.eq.s32.totalorder %s9, 3
    %p101 = por %p99, %p100
    %p102 = scmp.ne.s32.totalorder %s94, %s97
    %p103 = scmp.eq.s32.totalorder %s9, 0
    %p104 = por %p102, %p103
    %p105 = scmp.ne.s32.totalorder %s94, %s97
    %p106 = scmp.eq.s32.totalorder %s14, 3
    %p107 = por %p105, %p106
    %p108 = scmp.ne.s32.totalorder %s97, %s98
    %p109 = scmp.eq.s32.totalorder %s14, 0
    %p110 = por %p108, %p109
    %p111 = scmp.ne.s32.totalorder %s97, %s98
    %p112 = scmp.eq.s32.totalorder %s15, 3
    %p113 = por %p111, %p112
    %p115 = scmp.ne.s32.totalorder %s98, %s114
    %p116 = scmp.eq.s32.totalorder %s15, 0
    %p117 = por %p115, %p116
    %s118 = ssub.s32 %s16, %s35
    %s119 = ssub.s32 %s17, %s31
    %s120 = sor.u32 %s118, %s119
    %p121 = scmp.eq.s32.totalorder %s120, 0
    %s123 = sadd.s32 %s122, 1
    %s124 = scalar_select %p121, %s122, %s123
    %p127 = pneg %p121
    %p128 = scmp.eq.s32.totalorder %s9, 3
    %p129 = por %p127, %p128
    %p130 = scmp.ne.s32.totalorder %s122, %s125
    %p131 = scmp.eq.s32.totalorder %s9, 0
    %p132 = por %p130, %p131
    %p133 = scmp.ne.s32.totalorder %s122, %s125
    %p134 = scmp.eq.s32.totalorder %s14, 3
    %p135 = por %p133, %p134
    %p136 = scmp.ne.s32.totalorder %s125, %s126
    %p137 = scmp.eq.s32.totalorder %s14, 0
    %p138 = por %p136, %p137
    %p139 = scmp.ne.s32.totalorder %s125, %s126
    %p140 = scmp.eq.s32.totalorder %s15, 3
    %p141 = por %p139, %p140
    %p143 = scmp.ne.s32.totalorder %s126, %s142
    %p144 = scmp.eq.s32.totalorder %s15, 0
    %p145 = por %p143, %p144
    %p146 = scmp.le.s32.totalorder 1, %s9
    %p147 = scmp.lt.s32.totalorder %s9, 5
    %p148 = pnand %p146, %p147
    %p149 = pneg %p148
    // Predicated region
    $region9: #{matmul_bias_act.1} parent=5 // pred_check
      _
    $region10: #{matmul_bias_act.1} parent=5 // pred_check_branch
      %151 = sbr.rel (%p148) target = $region12
    $region11: #{matmul_bias_act.1} parent=5 // pred_region
      %s152 = ssub.s32 %s9, 1
      // Predicated region
      $region13: #{matmul_bias_act.1} parent=11 // pred_check
        %p153 = pneg %p84
      $region14: #{matmul_bias_act.1} parent=11 // pred_check_branch
        %155 = sbr.rel (%p153) target = $region16
      $region15: #{matmul_bias_act.1} parent=11 // pred_region
        %s156 = smul.u32 25, %s21
        %p157 = scmp.lt.s32.totalorder %s156, 24
        %s158 = scalar_select %p157, %s156, 24
        %p159 = scmp.lt.s32.totalorder %s20, 0
        %s160 = scalar_select %p159, %s20, 0
        %s161 = sadd.s32 %s160, %s158
        %s162 = smul.addr %s161, 4
        %s163 = scalar_lea.vmem %s1, %s162
        %s164 = smul.u32 25, %s21
      $region16: #{matmul_bias_act.1} parent=11 // pred_fallthru
        _
      // Predicated region
      $region17: #{matmul_bias_act.1} parent=11 // pred_check
        %p165 = pneg %p110
      $region18: #{matmul_bias_act.1} parent=11 // pred_check_branch
        %167 = sbr.rel (%p165) target = $region20
      $region19: #{matmul_bias_act.1} parent=11 // pred_region
        %p168 = scmp.lt.s32.totalorder %s20, 0
        %s169 = scalar_select %p168, %s20, 0
        %s170 = scalar_lea.vmem %s2, %s169
      $region20: #{matmul_bias_act.1} parent=11 // pred_fallthru
        _
    $region12: #{matmul_bias_act.1} parent=5 // pred_fallthru
      _
    %p171 = scmp.lt.s32.totalorder %s9, 4
    // Predicated region
    $region21: #{matmul_bias_act.1} parent=5 // pred_check
      %p172 = pneg %p171
    $region22: #{matmul_bias_act.1} parent=5 // pred_check_branch
      %174 = sbr.rel (%p172) target = $region24
    $region23: #{matmul_bias_act.1} parent=5 // pred_region
      // Predicated region
      $region25: #{matmul_bias_act.1} parent=23 // pred_check
        %p175 = pneg %p50
      $region26: #{matmul_bias_act.1} parent=23 // pred_check_branch
        %177 = sbr.rel (%p175) target = $region28
      $region27: #{matmul_bias_act.1} parent=23 // pred_region
        %s178 = smul.u32 16, %s16
        %s179 = smul.u32 2, %s18
        %p180 = scmp.lt.s32.totalorder %s178, 63
        %s181 = scalar_select %p180, %s178, 63
        %p182 = scmp.lt.s32.totalorder %s179, 1
        %s183 = scalar_select %p182, %s179, 1
        %s184 = smul.addr %s181, 2
        %s185 = sadd.s32 %s183, %s184
        %s186 = smul.addr %s185, 4
        %s187 = scalar_lea.vmem %s0, %s186
        %s188 = smul.u32 16, %s16
        %s189 = smul.u32 2, %s18
      $region28: #{matmul_bias_act.1} parent=23 // pred_fallthru
        _
    $region24: #{matmul_bias_act.1} parent=5 // pred_fallthru
      _
    %p190 = scmp.le.s32.totalorder 1, %s9
    %p191 = scmp.lt.s32.totalorder %s9, 5
    %p192 = pnand %p190, %p191
    %p193 = pneg %p192
    // Predicated region
    $region29: #{matmul_bias_act.1} parent=5 // pred_check
      _
    $region30: #{matmul_bias_act.1} parent=5 // pred_check_branch
      %195 = sbr.rel (%p192) target = $region32
    $region31: #{matmul_bias_act.1} parent=5 // pred_region
      %s196 = ssub.s32 %s9, 1
      %s197 = smul.u32 16, %s19
      %s198 = smul.u32 2, %s21
      %p199 = scmp.lt.s32.totalorder %s197, 63
      %s200 = scalar_select %p199, %s197, 63
      %p201 = scmp.lt.s32.totalorder %s198, 1
      %s202 = scalar_select %p201, %s198, 1
      %s203 = smul.addr %s200, 2
      %s204 = sadd.s32 %s202, %s203
      %s205 = smul.addr %s204, 4
      %s206 = scalar_lea.vmem %s0, %s205
      %p207 = pneg %p56
      %p208 = pneg %p53
      %s209 = smul.u32 25, %s21
      %p210 = scmp.lt.s32.totalorder %s209, 24
      %s211 = scalar_select %p210, %s209, 24
      %p212 = scmp.lt.s32.totalorder %s20, 0
      %s213 = scalar_select %p212, %s20, 0
      %s214 = sadd.s32 %s213, %s211
      %s215 = smul.addr %s214, 4
      %s216 = scalar_lea.vmem %s1, %s215
      %p217 = pneg %p84
      %p218 = pneg %p81
      %p219 = scmp.lt.s32.totalorder %s20, 0
      %s220 = scalar_select %p219, %s20, 0
      %s221 = scalar_lea.vmem %s2, %s220
      %p222 = pneg %p110
      %p223 = pneg %p107
      %p224 = pneg %p138
      %p225 = pneg %p135
      %s226 = smul.u32 16, %s19
      %p227 = scmp.lt.s32.totalorder %s226, 63
      %s228 = scalar_select %p227, %s226, 63
      %p229 = scmp.lt.s32.totalorder %s20, 0
      %s230 = scalar_select %p229, %s20, 0
      %s231 = sadd.s32 %s230, %s228
      %s232 = smul.addr %s231, 4
      %s233 = scalar_lea.vmem %s3, %s232
      %s234 = smul.u32 16, %s19
      %s235 = smul.u32 2, %s21
      %p236 = scmp.lt.s32.totalorder %s234, 63
      %s237 = scalar_select %p236, %s234, 63
      %p238 = scmp.lt.s32.totalorder %s235, 1
      %s239 = scalar_select %p238, %s235, 1
      %s240 = smul.addr %s237, 2
      %s241 = sadd.s32 %s239, %s240
      %s242 = smul.addr %s241, 4
      %s243 = scalar_lea.vmem %s0, %s242
      %s244 = smul.u32 16, %s19
      %s245 = smul.u32 2, %s21
      %s246 = smul.u32 25, %s21
      %p247 = scmp.lt.s32.totalorder %s246, 24
      %s248 = scalar_select %p247, %s246, 24
      %p249 = scmp.lt.s32.totalorder %s20, 0
      %s250 = scalar_select %p249, %s20, 0
      %s251 = sadd.s32 %s250, %s248
      %s252 = smul.addr %s251, 4
      %s253 = scalar_lea.vmem %s1, %s252
      %s254 = smul.u32 25, %s21
      %p255 = scmp.lt.s32.totalorder %s20, 0
      %s256 = scalar_select %p255, %s20, 0
      %s257 = scalar_lea.vmem %s2, %s256
      %s258 = smul.u32 16, %s19
      %p259 = scmp.lt.s32.totalorder %s258, 63
      %s260 = scalar_select %p259, %s258, 63
      %p261 = scmp.lt.s32.totalorder %s20, 0
      %s262 = scalar_select %p261, %s20, 0
      %s263 = sadd.s32 %s262, %s260
      %s264 = smul.addr %s263, 4
      %s265 = scalar_lea.vmem %s3, %s264
      %s266 = smul.u32 16, %s19
      %p268 = scmp.eq.s32.totalorder %s21, 0
      // Predicated region
      $region33: #{matmul_bias_act.1} parent=31 // pred_check
        %p269 = pneg %p268
      $region34: #{matmul_bias_act.1} parent=31 // pred_check_branch
        %271 = sbr.rel (%p269) target = $region36
      $region35: #{matmul_bias_act.1} parent=31 // pred_region
        %vm272 = vcmask 523264
        %273 = vst.msk [vmem:[#allocation2] sm:$0xff] %vm272, 0.0
        %274 = vst.msk [vmem:[#allocation2 + $0x8] sm:$0xff] %vm272, 0.0
        %275 = vst.msk [vmem:[#allocation2 + $0x10] sm:$0xff] %vm272, 0.0
        %276 = vst.msk [vmem:[#allocation2 + $0x18] sm:$0xff] %vm272, 0.0
        %277 = vst.msk [vmem:[#allocation2 + $0x20] sm:$0xff] %vm272, 0.0
        %278 = vst.msk [vmem:[#allocation2 + $0x28] sm:$0xff] %vm272, 0.0
        %279 = vst.msk [vmem:[#allocation2 + $0x30] sm:$0xff] %vm272, 0.0
        %280 = vst.msk [vmem:[#allocation2 + $0x38] sm:$0xff] %vm272, 0.0
        %281 = vst.msk [vmem:[#allocation2 + $0x40] sm:$0xff] %vm272, 0.0
        %282 = vst.msk [vmem:[#allocation2 + $0x48] sm:$0xff] %vm272, 0.0
        %283 = vst.msk [vmem:[#allocation2 + $0x50] sm:$0xff] %vm272, 0.0
        %284 = vst.msk [vmem:[#allocation2 + $0x58] sm:$0xff] %vm272, 0.0
        %285 = vst.msk [vmem:[#allocation2 + $0x60] sm:$0xff] %vm272, 0.0
        %286 = vst.msk [vmem:[#allocation2 + $0x68] sm:$0xff] %vm272, 0.0
        %287 = vst.msk [vmem:[#allocation2 + $0x70] sm:$0xff] %vm272, 0.0
        %288 = vst.msk [vmem:[#allocation2 + $0x78] sm:$0xff] %vm272, 0.0
      $region36: #{matmul_bias_act.1} parent=31 // pred_fallthru
        _
      %v289 = vld [vmem:[#allocation2] sm:$0xff]
      %v290 = vld [vmem:[#allocation2 + $0x8] sm:$0xff]
      %v291 = vld [vmem:[#allocation2 + $0x10] sm:$0xff]
      %v292 = vld [vmem:[#allocation2 + $0x18] sm:$0xff]
      %v293 = vld [vmem:[#allocation2 + $0x20] sm:$0xff]
      %v294 = vld [vmem:[#allocation2 + $0x28] sm:$0xff]
      %v295 = vld [vmem:[#allocation2 + $0x30] sm:$0xff]
      %v296 = vld [vmem:[#allocation2 + $0x38] sm:$0xff]
      %v297 = vld [vmem:[#allocation2 + $0x40] sm:$0xff]
      %v298 = vld [vmem:[#allocation2 + $0x48] sm:$0xff]
      %v299 = vld [vmem:[#allocation2 + $0x50] sm:$0xff]
      %v300 = vld [vmem:[#allocation2 + $0x58] sm:$0xff]
      %v301 = vld [vmem:[#allocation2 + $0x60] sm:$0xff]
      %v302 = vld [vmem:[#allocation2 + $0x68] sm:$0xff]
      %v303 = vld [vmem:[#allocation2 + $0x70] sm:$0xff]
      %v304 = vld [vmem:[#allocation2 + $0x78] sm:$0xff]
      %v305 = vld [vmem:[%s243] sm:$0xff]
      %v306 = vld [vmem:[%s243 + $0x8] sm:$0xff]
      %v307 = vld [vmem:[%s243 + $0x10] sm:$0xff]
      %v308 = vld [vmem:[%s243 + $0x18] sm:$0xff]
      %v309 = vld [vmem:[%s243 + $0x20] sm:$0xff]
      %v310 = vld [vmem:[%s243 + $0x28] sm:$0xff]
      %v311 = vld [vmem:[%s243 + $0x30] sm:$0xff]
      %v312 = vld [vmem:[%s243 + $0x38] sm:$0xff]
      %v313 = vld [vmem:[%s243 + $0x40] sm:$0xff]
      %v314 = vld [vmem:[%s243 + $0x48] sm:$0xff]
      %v315 = vld [vmem:[%s243 + $0x50] sm:$0xff]
      %v316 = vld [vmem:[%s243 + $0x58] sm:$0xff]
      %v317 = vld [vmem:[%s243 + $0x60] sm:$0xff]
      %v318 = vld [vmem:[%s243 + $0x68] sm:$0xff]
      %v319 = vld [vmem:[%s243 + $0x70] sm:$0xff]
      %v320 = vld [vmem:[%s243 + $0x78] sm:$0xff]
      %v321 = vld [vmem:[%s253] sm:$0xf]
      %v322 = vld [vmem:[%s253 + $0x4] sm:$0xf]
      %v323 = vld [vmem:[%s253 + $0x8] sm:$0xf]
      %v324 = vld [vmem:[%s253 + $0xc] sm:$0xf]
      %v325 = vld [vmem:[%s253 + $0x10] sm:$0xf]
      %v326 = vld [vmem:[%s253 + $0x14] sm:$0xf]
      %v327 = vld [vmem:[%s253 + $0x18] sm:$0xf]
      %v328 = vld [vmem:[%s253 + $0x1c] sm:$0xf]
      %v329 = vld [vmem:[%s253 + $0x20] sm:$0xf]
      %v330 = vld [vmem:[%s253 + $0x24] sm:$0xf]
      %v331 = vld [vmem:[%s253 + $0x28] sm:$0xf]
      %v332 = vld [vmem:[%s253 + $0x2c] sm:$0xf]
      %v333 = vld [vmem:[%s253 + $0x30] sm:$0xf]
      %v334 = vld [vmem:[%s253 + $0x34] sm:$0xf]
      %v335 = vld [vmem:[%s253 + $0x38] sm:$0xf]
      %v336 = vld [vmem:[%s253 + $0x3c] sm:$0xf]
      %v337 = vld [vmem:[%s253 + $0x40] sm:$0xf]
      %v338 = vld [vmem:[%s253 + $0x44] sm:$0xf]
      %v339 = vld [vmem:[%s253 + $0x48] sm:$0xf]
      %v340 = vld [vmem:[%s253 + $0x4c] sm:$0xf]
      %v341 = vld [vmem:[%s253 + $0x50] sm:$0xf]
      %v342 = vld [vmem:[%s253 + $0x54] sm:$0xf]
      %v343 = vld [vmem:[%s253 + $0x58] sm:$0xf]
      %v344 = vld [vmem:[%s253 + $0x5c] sm:$0xf]
      %v345 = vld [vmem:[%s253 + $0x60] sm:$0x3]
      %v362 = vunpack.c.l.b16 %v305
      %v363 = vunpack.c.h.b16 %v305
      %v364 = vunpack.c.l.b16 %v306
      %v365 = vunpack.c.h.b16 %v306
      %v366 = vunpack.c.l.b16 %v307
      %v367 = vunpack.c.h.b16 %v307
      %v368 = vunpack.c.l.b16 %v308
      %v369 = vunpack.c.h.b16 %v308
      %v370 = vunpack.c.l.b16 %v309
      %v371 = vunpack.c.h.b16 %v309
      %v372 = vunpack.c.l.b16 %v310
      %v373 = vunpack.c.h.b16 %v310
      %v374 = vunpack.c.l.b16 %v311
      %v375 = vunpack.c.h.b16 %v311
      %v376 = vunpack.c.l.b16 %v312
      %v377 = vunpack.c.h.b16 %v312
      %v378 = vunpack.c.l.b16 %v313
      %v379 = vunpack.c.h.b16 %v313
      %v380 = vunpack.c.l.b16 %v314
      %v381 = vunpack.c.h.b16 %v314
      %v382 = vunpack.c.l.b16 %v315
      %v383 = vunpack.c.h.b16 %v315
      %v384 = vunpack.c.l.b16 %v316
      %v385 = vunpack.c.h.b16 %v316
      %v386 = vunpack.c.l.b16 %v317
      %v387 = vunpack.c.h.b16 %v317
      %v388 = vunpack.c.l.b16 %v318
      %v389 = vunpack.c.h.b16 %v318
      %v390 = vunpack.c.l.b16 %v319
      %v391 = vunpack.c.h.b16 %v319
      %v392 = vunpack.c.l.b16 %v320
      %v393 = vunpack.c.h.b16 %v320
      %v394 = vpack.c.b16 %v364, %v362
      %v395 = vpack.c.b16 %v365, %v363
      %v396 = vpack.c.b16 %v368, %v366
      %v397 = vpack.c.b16 %v369, %v367
      %v398 = vpack.c.b16 %v372, %v370
      %v399 = vpack.c.b16 %v373, %v371
      %v400 = vpack.c.b16 %v376, %v374
      %v401 = vpack.c.b16 %v377, %v375
      %v402 = vpack.c.b16 %v380, %v378
      %v403 = vpack.c.b16 %v381, %v379
      %v404 = vpack.c.b16 %v384, %v382
      %v405 = vpack.c.b16 %v385, %v383
      %v406 = vpack.c.b16 %v388, %v386
      %v407 = vpack.c.b16 %v389, %v387
      %v408 = vpack.c.b16 %v392, %v390
      %v409 = vpack.c.b16 %v393, %v391
      %v443 = vunpack.c.l.b16 %v321
      %v444 = vunpack.c.l.b16 %v322
      %v445 = vunpack.c.l.b16 %v323
      %v446 = vunpack.c.l.b16 %v324
      %v447 = vunpack.c.l.b16 %v325
      %v448 = vunpack.c.l.b16 %v326
      %v449 = vunpack.c.l.b16 %v327
      %v450 = vunpack.c.l.b16 %v328
      %v451 = vunpack.c.l.b16 %v329
      %v452 = vunpack.c.l.b16 %v330
      %v453 = vunpack.c.l.b16 %v331
      %v454 = vunpack.c.l.b16 %v332
      %v455 = vunpack.c.l.b16 %v333
      %v456 = vunpack.c.l.b16 %v334
      %v457 = vunpack.c.l.b16 %v335
      %v458 = vunpack.c.l.b16 %v336
      %v459 = vunpack.c.l.b16 %v337
      %v460 = vunpack.c.l.b16 %v338
      %v461 = vunpack.c.l.b16 %v339
      %v462 = vunpack.c.l.b16 %v340
      %v463 = vunpack.c.l.b16 %v341
      %v464 = vunpack.c.l.b16 %v342
      %v465 = vunpack.c.l.b16 %v343
      %v466 = vunpack.c.l.b16 %v344
      %v467 = vunpack.c.l.b16 %v345
      %v468 = vpack.c.b16 %v444, %v443
      %v469 = vpack.c.b16 %v446, %v445
      %v470 = vpack.c.b16 %v448, %v447
      %v471 = vpack.c.b16 %v450, %v449
      %v472 = vpack.c.b16 %v452, %v451
      %v473 = vpack.c.b16 %v454, %v453
      %v474 = vpack.c.b16 %v456, %v455
      %v475 = vpack.c.b16 %v458, %v457
      %v476 = vpack.c.b16 %v460, %v459
      %v477 = vpack.c.b16 %v462, %v461
      %v478 = vpack.c.b16 %v464, %v463
      %v479 = vpack.c.b16 %v466, %v465
      %v480 = vpack.c.b16 %v467, %v467
      %vm493 = vcmask 556032
      %v495 = vsel %vm493, %v395, 0
      %v498 = vsel %vm493, %v397, 0
      %v501 = vsel %vm493, %v399, 0
      %v504 = vsel %vm493, %v401, 0
      %v507 = vsel %vm493, %v403, 0
      %v510 = vsel %vm493, %v405, 0
      %v513 = vsel %vm493, %v407, 0
      %v516 = vsel %vm493, %v409, 0
      %vm518 = vcmask 1041408
      %v520 = vsel %vm518, %v480, 0
      %522 = vmatprep.subr.bf16.mxu0 0
      %523 = vmatpush1.bf16.msra.mxu0 %v468
      %524 = vmatprep.subr.bf16.mxu0 0
      %525 = vmatpush1.bf16.msra.mxu0 %v469
      %526 = vmatprep.subr.bf16.mxu0 0
      %527 = vmatpush1.bf16.msra.mxu0 %v470
      %528 = vmatprep.subr.bf16.mxu0 0
      %529 = vmatpush1.bf16.msra.mxu0 %v471
      %530 = vmatprep.subr.bf16.mxu0 0
      %531 = vmatpush1.bf16.msra.mxu0 %v472
      %532 = vmatprep.subr.bf16.mxu0 0
      %533 = vmatpush1.bf16.msra.mxu0 %v473
      %534 = vmatprep.subr.bf16.mxu0 0
      %535 = vmatpush1.bf16.msra.mxu0 %v474
      %536 = vmatprep.subr.bf16.mxu0 0
      %537 = vmatpush1.bf16.msra.mxu0 %v475
      %538 = vmatprep.subr.bf16.mxu0 0
      %539 = vmatpush1.bf16.msra.mxu0 %v476
      %540 = vmatprep.subr.bf16.mxu0 0
      %541 = vmatpush1.bf16.msra.mxu0 %v477
      %542 = vmatprep.subr.bf16.mxu0 0
      %543 = vmatpush1.bf16.msra.mxu0 %v478
      %544 = vmatprep.subr.bf16.mxu0 0
      %545 = vmatpush1.bf16.msra.mxu0 %v479
      %546 = vmatprep.subr.bf16.mxu0 0
      %547 = vmatpush1.bf16.msra.mxu0 %v520
      %548 = vmatprep.subr.bf16.mxu0 0
      %549 = vmatpush1.bf16.msra.mxu0 0
      %550 = vmatprep.subr.bf16.mxu0 0
      %551 = vmatpush1.bf16.msra.mxu0 0
      %552 = vmatprep.subr.bf16.mxu0 0
      %553 = vmatpush1.bf16.msra.mxu0 0
      %554 = vmatprep.mubr.bf16.mxu0 %v495
      %555 = vmatmul.mubr.bf16.gmra.mrb[0].mxu0 %v394
      %v556 = vpop.f32.mrb[0].mxu0
      %v557 = vadd.f32 0.0, %v556
      %v558 = vpop.f32.mrb[0].mxu0
      %v559 = vpop.f32.mrb[0].mxu0
      %v560 = vadd.f32 0.0, %v559
      %v561 = vpop.f32.mrb[0].mxu0
      %562 = vmatprep.mubr.bf16.mxu0 %v498
      %563 = vmatmul.mubr.bf16.gmra.mrb[0].mxu0 %v396
      %v564 = vpop.f32.mrb[0].mxu0
      %v565 = vadd.f32 0.0, %v564
      %v566 = vpop.f32.mrb[0].mxu0
      %v567 = vpop.f32.mrb[0].mxu0
      %v568 = vadd.f32 0.0, %v567
      %v569 = vpop.f32.mrb[0].mxu0
      %570 = vmatprep.mubr.bf16.mxu0 %v501
      %571 = vmatmul.mubr.bf16.gmra.mrb[0].mxu0 %v398
      %v572 = vpop.f32.mrb[0].mxu0
      %v573 = vadd.f32 0.0, %v572
      %v574 = vpop.f32.mrb[0].mxu0
      %v575 = vpop.f32.mrb[0].mxu0
      %v576 = vadd.f32 0.0, %v575
      %v577 = vpop.f32.mrb[0].mxu0
      %578 = vmatprep.mubr.bf16.mxu0 %v504
      %579 = vmatmul.mubr.bf16.gmra.mrb[0].mxu0 %v400
      %v580 = vpop.f32.mrb[0].mxu0
      %v581 = vadd.f32 0.0, %v580
      %v582 = vpop.f32.mrb[0].mxu0
      %v583 = vpop.f32.mrb[0].mxu0
      %v584 = vadd.f32 0.0, %v583
      %v585 = vpop.f32.mrb[0].mxu0
      %586 = vmatprep.mubr.bf16.mxu0 %v507
      %587 = vmatmul.mubr.bf16.gmra.mrb[0].mxu0 %v402
      %v588 = vpop.f32.mrb[0].mxu0
      %v589 = vadd.f32 0.0, %v588
      %v590 = vpop.f32.mrb[0].mxu0
      %v591 = vpop.f32.mrb[0].mxu0
      %v592 = vadd.f32 0.0, %v591
      %v593 = vpop.f32.mrb[0].mxu0
      %594 = vmatprep.mubr.bf16.mxu0 %v510
      %595 = vmatmul.mubr.bf16.gmra.mrb[0].mxu0 %v404
      %v596 = vpop.f32.mrb[0].mxu0
      %v597 = vadd.f32 0.0, %v596
      %v598 = vpop.f32.mrb[0].mxu0
      %v599 = vpop.f32.mrb[0].mxu0
      %v600 = vadd.f32 0.0, %v599
      %v601 = vpop.f32.mrb[0].mxu0
      %602 = vmatprep.mubr.bf16.mxu0 %v513
      %603 = vmatmul.mubr.bf16.gmra.mrb[0].mxu0 %v406
      %v604 = vpop.f32.mrb[0].mxu0
      %v605 = vadd.f32 0.0, %v604
      %v606 = vpop.f32.mrb[0].mxu0
      %v607 = vpop.f32.mrb[0].mxu0
      %v608 = vadd.f32 0.0, %v607
      %v609 = vpop.f32.mrb[0].mxu0
      %610 = vmatprep.mubr.bf16.mxu0 %v516
      %611 = vmatmul.mubr.bf16.gmra.mrb[0].mxu0 %v408
      %v612 = vpop.f32.mrb[0].mxu0
      %v613 = vadd.f32 0.0, %v612
      %v614 = vpop.f32.mrb[0].mxu0
      %v615 = vpop.f32.mrb[0].mxu0
      %v616 = vadd.f32 0.0, %v615
      %v617 = vpop.f32.mrb[0].mxu0
      %618 = vdwg.mxu0
      %v619 = vadd.f32 %v289, %v557
      %v620 = vadd.f32 %v290, %v560
      %v621 = vadd.f32 %v291, %v565
      %v622 = vadd.f32 %v292, %v568
      %v623 = vadd.f32 %v293, %v573
      %v624 = vadd.f32 %v294, %v576
      %v625 = vadd.f32 %v295, %v581
      %v626 = vadd.f32 %v296, %v584
      %v627 = vadd.f32 %v297, %v589
      %v628 = vadd.f32 %v298, %v592
      %v629 = vadd.f32 %v299, %v597
      %v630 = vadd.f32 %v300, %v600
      %v631 = vadd.f32 %v301, %v605
      %v632 = vadd.f32 %v302, %v608
      %v633 = vadd.f32 %v303, %v613
      %v634 = vadd.f32 %v304, %v616
      %vm635 = vcmask 523264
      %636 = vst.msk [vmem:[#allocation2] sm:$0xff] %vm635, %v619
      %637 = vst.msk [vmem:[#allocation2 + $0x8] sm:$0xff] %vm635, %v620
      %638 = vst.msk [vmem:[#allocation2 + $0x10] sm:$0xff] %vm635, %v621
      %639 = vst.msk [vmem:[#allocation2 + $0x18] sm:$0xff] %vm635, %v622
      %640 = vst.msk [vmem:[#allocation2 + $0x20] sm:$0xff] %vm635, %v623
      %641 = vst.msk [vmem:[#allocation2 + $0x28] sm:$0xff] %vm635, %v624
      %642 = vst.msk [vmem:[#allocation2 + $0x30] sm:$0xff] %vm635, %v625
      %643 = vst.msk [vmem:[#allocation2 + $0x38] sm:$0xff] %vm635, %v626
      %644 = vst.msk [vmem:[#allocation2 + $0x40] sm:$0xff] %vm635, %v627
      %645 = vst.msk [vmem:[#allocation2 + $0x48] sm:$0xff] %vm635, %v628
      %646 = vst.msk [vmem:[#allocation2 + $0x50] sm:$0xff] %vm635, %v629
      %647 = vst.msk [vmem:[#allocation2 + $0x58] sm:$0xff] %vm635, %v630
      %648 = vst.msk [vmem:[#allocation2 + $0x60] sm:$0xff] %vm635, %v631
      %649 = vst.msk [vmem:[#allocation2 + $0x68] sm:$0xff] %vm635, %v632
      %650 = vst.msk [vmem:[#allocation2 + $0x70] sm:$0xff] %vm635, %v633
      %651 = vst.msk [vmem:[#allocation2 + $0x78] sm:$0xff] %vm635, %v634
      // Predicated region
      $region37: #{matmul_bias_act.1} parent=31 // pred_check
        %p652 = pneg %p268
      $region38: #{matmul_bias_act.1} parent=31 // pred_check_branch
        %654 = sbr.rel (%p652) target = $region40
      $region39: #{matmul_bias_act.1} parent=31 // pred_region
        %v655 = vld [vmem:[#allocation2] sm:$0xff]
        %v656 = vld [vmem:[#allocation2 + $0x8] sm:$0xff]
        %v657 = vld [vmem:[#allocation2 + $0x10] sm:$0xff]
        %v658 = vld [vmem:[#allocation2 + $0x18] sm:$0xff]
        %v659 = vld [vmem:[#allocation2 + $0x20] sm:$0xff]
        %v660 = vld [vmem:[#allocation2 + $0x28] sm:$0xff]
        %v661 = vld [vmem:[#allocation2 + $0x30] sm:$0xff]
        %v662 = vld [vmem:[#allocation2 + $0x38] sm:$0xff]
        %v663 = vld [vmem:[#allocation2 + $0x40] sm:$0xff]
        %v664 = vld [vmem:[#allocation2 + $0x48] sm:$0xff]
        %v665 = vld [vmem:[#allocation2 + $0x50] sm:$0xff]
        %v666 = vld [vmem:[#allocation2 + $0x58] sm:$0xff]
        %v667 = vld [vmem:[#allocation2 + $0x60] sm:$0xff]
        %v668 = vld [vmem:[#allocation2 + $0x68] sm:$0xff]
        %v669 = vld [vmem:[#allocation2 + $0x70] sm:$0xff]
        %v670 = vld [vmem:[#allocation2 + $0x78] sm:$0xff]
        %v671 = vld [vmem:[%s257] sm:$0x1]
        %v673 = vlaneseq
        %v674 = vshrl.u32 %v673, 7
        %v675 = vsub.s32 0, %v674
        %v676 = vrot.slane %v671, %v675
        %v678 = vadd.f32 %v655, %v676
        %v679 = vadd.f32 %v656, %v676
        %v680 = vadd.f32 %v657, %v676
        %v681 = vadd.f32 %v658, %v676
        %v682 = vadd.f32 %v659, %v676
        %v683 = vadd.f32 %v660, %v676
        %v684 = vadd.f32 %v661, %v676
        %v685 = vadd.f32 %v662, %v676
        %v686 = vadd.f32 %v663, %v676
        %v687 = vadd.f32 %v664, %v676
        %v688 = vadd.f32 %v665, %v676
        %v689 = vadd.f32 %v666, %v676
        %v690 = vadd.f32 %v667, %v676
        %v691 = vadd.f32 %v668, %v676
        %v692 = vadd.f32 %v669, %v676
        %v693 = vadd.f32 %v670, %v676
        %v694 = vmax.f32 %v678, 0.0
        %v695 = vmax.f32 %v679, 0.0
        %v696 = vmax.f32 %v680, 0.0
        %v697 = vmax.f32 %v681, 0.0
        %v698 = vmax.f32 %v682, 0.0
        %v699 = vmax.f32 %v683, 0.0
        %v700 = vmax.f32 %v684, 0.0
        %v701 = vmax.f32 %v685, 0.0
        %v702 = vmax.f32 %v686, 0.0
        %v703 = vmax.f32 %v687, 0.0
        %v704 = vmax.f32 %v688, 0.0
        %v705 = vmax.f32 %v689, 0.0
        %v706 = vmax.f32 %v690, 0.0
        %v707 = vmax.f32 %v691, 0.0
        %v708 = vmax.f32 %v692, 0.0
        %v709 = vmax.f32 %v693, 0.0
        %v710 = vpack.c.bf16 %v695, %v694
        %v711 = vpack.c.bf16 %v697, %v696
        %v712 = vpack.c.bf16 %v699, %v698
        %v713 = vpack.c.bf16 %v701, %v700
        %v714 = vpack.c.bf16 %v703, %v702
        %v715 = vpack.c.bf16 %v705, %v704
        %v716 = vpack.c.bf16 %v707, %v706
        %v717 = vpack.c.bf16 %v709, %v708
        %v726 = vunpack.c.l.b16 %v710
        %v727 = vunpack.c.h.b16 %v710
        %v728 = vunpack.c.l.b16 %v711
        %v729 = vunpack.c.h.b16 %v711
        %v730 = vunpack.c.l.b16 %v712
        %v731 = vunpack.c.h.b16 %v712
        %v732 = vunpack.c.l.b16 %v713
        %v733 = vunpack.c.h.b16 %v713
        %v734 = vunpack.c.l.b16 %v714
        %v735 = vunpack.c.h.b16 %v714
        %v736 = vunpack.c.l.b16 %v715
        %v737 = vunpack.c.h.b16 %v715
        %v738 = vunpack.c.l.b16 %v716
        %v739 = vunpack.c.h.b16 %v716
        %v740 = vunpack.c.l.b16 %v717
        %v741 = vunpack.c.h.b16 %v717
        %v742 = vpack.c.b16 %v726, %v726
        %v743 = vpack.c.b16 %v727, %v727
        %v744 = vpack.c.b16 %v728, %v728
        %v745 = vpack.c.b16 %v729, %v729
        %v746 = vpack.c.b16 %v730, %v730
        %v747 = vpack.c.b16 %v731, %v731
        %v748 = vpack.c.b16 %v732, %v732
        %v749 = vpack.c.b16 %v733, %v733
        %v750 = vpack.c.b16 %v734, %v734
        %v751 = vpack.c.b16 %v735, %v735
        %v752 = vpack.c.b16 %v736, %v736
        %v753 = vpack.c.b16 %v737, %v737
        %v754 = vpack.c.b16 %v738, %v738
        %v755 = vpack.c.b16 %v739, %v739
        %v756 = vpack.c.b16 %v740, %v740
        %v757 = vpack.c.b16 %v741, %v741
        %vm774 = vcmask 519168
        %775 = vst.msk [vmem:[%s265] sm:$0xf] %vm774, %v742
        %776 = vst.msk [vmem:[%s265 + $0x4] sm:$0xf] %vm774, %v743
        %777 = vst.msk [vmem:[%s265 + $0x8] sm:$0xf] %vm774, %v744
        %778 = vst.msk [vmem:[%s265 + $0xc] sm:$0xf] %vm774, %v745
        %779 = vst.msk [vmem:[%s265 + $0x10] sm:$0xf] %vm774, %v746
        %780 = vst.msk [vmem:[%s265 + $0x14] sm:$0xf] %vm774, %v747
        %781 = vst.msk [vmem:[%s265 + $0x18] sm:$0xf] %vm774, %v748
        %782 = vst.msk [vmem:[%s265 + $0x1c] sm:$0xf] %vm774, %v749
        %783 = vst.msk [vmem:[%s265 + $0x20] sm:$0xf] %vm774, %v750
        %784 = vst.msk [vmem:[%s265 + $0x24] sm:$0xf] %vm774, %v751
        %785 = vst.msk [vmem:[%s265 + $0x28] sm:$0xf] %vm774, %v752
        %786 = vst.msk [vmem:[%s265 + $0x2c] sm:$0xf] %vm774, %v753
        %787 = vst.msk [vmem:[%s265 + $0x30] sm:$0xf] %vm774, %v754
        %788 = vst.msk [vmem:[%s265 + $0x34] sm:$0xf] %vm774, %v755
        %789 = vst.msk [vmem:[%s265 + $0x38] sm:$0xf] %vm774, %v756
        %790 = vst.msk [vmem:[%s265 + $0x3c] sm:$0xf] %vm774, %v757
      $region40: #{matmul_bias_act.1} parent=31 // pred_fallthru
        _
      %s791 = smul.u32 16, %s19
      %p792 = scmp.lt.s32.totalorder %s791, 63
      %s793 = scalar_select %p792, %s791, 63
      %p794 = scmp.lt.s32.totalorder %s20, 0
      %s795 = scalar_select %p794, %s20, 0
      %s796 = sadd.s32 %s795, %s793
      %s797 = smul.addr %s796, 4
      %s798 = scalar_lea.vmem %s3, %s797
      // Predicated region
      $region41: #{matmul_bias_act.1} parent=31 // pred_check
        %p799 = pneg %p135
      $region42: #{matmul_bias_act.1} parent=31 // pred_check_branch
        %801 = sbr.rel (%p799) target = $region44
      $region43: #{matmul_bias_act.1} parent=31 // pred_region
        %s802 = smul.u32 16, %s19
      $region44: #{matmul_bias_act.1} parent=31 // pred_fallthru
        _
    $region32: #{matmul_bias_act.1} parent=5 // pred_fallthru
      _
    %p803 = scmp.le.s32.totalorder 2, %s9
    // Predicated region
    $region45: #{matmul_bias_act.1} parent=5 // pred_check
      %p804 = pneg %p803
    $region46: #{matmul_bias_act.1} parent=5 // pred_check_branch
      %806 = sbr.rel (%p804) target = $region48
    $region47: #{matmul_bias_act.1} parent=5 // pred_region
      %s807 = ssub.s32 %s9, 2
      // Predicated region
      $region49: #{matmul_bias_act.1} parent=47 // pred_check
        %p808 = pneg %p141
      $region50: #{matmul_bias_act.1} parent=47 // pred_check_branch
        %810 = sbr.rel (%p808) target = $region52
      $region51: #{matmul_bias_act.1} parent=47 // pred_region
        %s811 = smul.u32 16, %s22
        %p812 = scmp.lt.s32.totalorder %s811, 63
        %s813 = scalar_select %p812, %s811, 63
        %p814 = scmp.lt.s32.totalorder %s23, 0
        %s815 = scalar_select %p814, %s23, 0
        %s816 = sadd.s32 %s815, %s813
        %s817 = smul.addr %s816, 4
        %s818 = scalar_lea.vmem %s3, %s817
      $region52: #{matmul_bias_act.1} parent=47 // pred_fallthru
        _
    $region48: #{matmul_bias_act.1} parent=5 // pred_fallthru
      _
  $region6: #{matmul_bias_act.1} parent=0 // loop_footer
    %s13 = sadd.s32 1, %s9
  $region7: #{matmul_bias_act.1} parent=0 // loop_footer_branch
    %8 = sbr.rel target = $region3
  $region8: #{matmul_bias_act.1} parent=0 // loop_exit
    _

</llo_original>
